<compile_context>
chip_gen: v7x
topology: tpu7x:2x2x1
jax: 0.10.0
libtpu: 0.0.40
codegen_flags: <defaults>
</compile_context>

<pallas_src>
import jax
import jax.numpy as jnp
from jax.experimental import pallas as pl
from jax.experimental.pallas import tpu as pltpu


def _rmsnorm_kernel(eps):
    def kernel(x_ref, w_ref, o_ref):
        # Promote to float32 (matches x.float() in the torch forward).
        x = x_ref[...].astype(jnp.float32)
        ms = jnp.mean(x * x, axis=-1, keepdims=True)
        inv = jax.lax.rsqrt(ms + eps)
        # w_ref is already float32 (cast hoisted to the wrapper).
        o_ref[...] = (x * inv * w_ref[...]).astype(o_ref.dtype)

    return kernel


def _rmsnorm_kernel_noweight(eps):
    def kernel(x_ref, o_ref):
        x = x_ref[...].astype(jnp.float32)
        ms = jnp.mean(x * x, axis=-1, keepdims=True)
        inv = jax.lax.rsqrt(ms + eps)
        o_ref[...] = (x * inv).astype(o_ref.dtype)

    return kernel


def _vmem_capacity_bytes():
    """Physical VMEM per TensorCore; falls back to the smallest (v7x) value."""
    try:
        return int(pltpu.get_tpu_info().vmem_capacity_bytes)
    except Exception:  # pragma: no cover - conservative fallback
        return 64 * 1024 * 1024


def _choose_row_tile(rows, hidden, in_itemsize, out_itemsize, vmem_cap):
    """Largest sublane-friendly row tile whose pipelined footprint fits VMEM."""
    # Sub-32-bit dtypes pack rows along sublanes; 32 rows fill bf16 vregs.
    base = 32 if in_itemsize < 4 else 8

    # Whole input fits one sublane group: single full-extent block (no masking).
    if rows <= base:
        return max(rows, 1)

    # ~3/8 of physical VMEM for the pipelined tiles + f32 intermediates,
    # capped at 56 MiB so 128 MiB parts (v5e/v6e) keep ample headroom.
    budget = max(min((vmem_cap * 3) // 8, 56 * 1024 * 1024), 4 * 1024 * 1024)

    # Double-buffered input + double-buffered output tiles, plus ~2 tile-sized
    # f32 intermediates the kernel materializes (x.float(), x*x / product).
    bytes_per_row = hidden * (2 * in_itemsize + 2 * out_itemsize + 2 * 4)
    max_rows = max(budget // max(bytes_per_row, 1), base)

    tile = min(int(max_rows), 4096)
    tile = max((tile // base) * base, base)

    rows_up = -(-rows // base) * base
    tile = min(tile, rows_up)

    # Keep the grid extent >= 2: shards the 'parallel' axis across v7x's two
    # TensorCores and keeps the input/output DMA pipeline overlapped.
    def extent(t):
        return -(-rows // t)

    while extent(tile) < 2 and tile > base:
        tile = max(((tile // 2) // base) * base, base)

    return tile


def rms_norm_pallas(x, weight=None, eps=1e-5, row_tile=None):
    """x: (..., hidden). weight: (hidden,) or None. Returns array with x.dtype."""
    orig_shape = x.shape
    hidden = orig_shape[-1]
    rows = 1
    for d in orig_shape[:-1]:
        rows *= d
    x2d = x.reshape(rows, hidden)

    in_itemsize = x.dtype.itemsize
    out_itemsize = x.dtype.itemsize
    vmem_cap = _vmem_capacity_bytes()

    if row_tile is None:
        row_tile = _choose_row_tile(rows, hidden, in_itemsize, out_itemsize, vmem_cap)

    # No HBM padding: Pallas masks writes on the partial last block.
    grid = (pl.cdiv(rows, row_tile),)

    has_weight = weight is not None

    # Explicit VMEM limit: double-buffered in/out tiles + 2x f32 intermediates
    # + resident weight + headroom, capped below physical capacity.
    tile_bytes = row_tile * hidden * (2 * in_itemsize + 2 * out_itemsize + 2 * 4)
    weight_bytes = (2 * hidden * 4) if has_weight else 0
    vmem_limit = int(min(tile_bytes + weight_bytes + 4 * 1024 * 1024,
                         max(vmem_cap - 8 * 1024 * 1024, 8 * 1024 * 1024)))

    cost = pl.CostEstimate(
        flops=4 * rows * hidden,
        transcendentals=rows,
        bytes_accessed=rows * hidden * (in_itemsize + out_itemsize)
        + (hidden * 4 if has_weight else 0),
    )

    x_spec = pl.BlockSpec((row_tile, hidden), lambda i: (i, 0))
    out_spec = pl.BlockSpec((row_tile, hidden), lambda i: (i, 0))

    if has_weight:
        # Weight applied in float32 (as in the torch code); cast hoisted here.
        w2d = weight.astype(jnp.float32).reshape(1, hidden)
        kernel = _rmsnorm_kernel(eps)
        in_specs = [x_spec, pl.BlockSpec((1, hidden), lambda i: (0, 0))]
        operands = (x2d, w2d)
    else:
        kernel = _rmsnorm_kernel_noweight(eps)
        in_specs = [x_spec]
        operands = (x2d,)

    out2d = pl.pallas_call(
        kernel,
        out_shape=jax.ShapeDtypeStruct((rows, hidden), x.dtype),
        grid_spec=pltpu.PrefetchScalarGridSpec(
            num_scalar_prefetch=0,
            grid=grid,
            in_specs=in_specs,
            out_specs=out_spec,
        ),
        compiler_params=pltpu.CompilerParams(
            dimension_semantics=("parallel",),
            vmem_limit_bytes=vmem_limit,
        ),
        cost_estimate=cost,
    )(*operands)

    return out2d.reshape(orig_shape)


def rms_norm_reference(x, weight, eps=1e-5):
    xf = x.astype(jnp.float32)
    out = xf * jax.lax.rsqrt(jnp.mean(xf * xf, axis=-1, keepdims=True) + eps)
    if weight is not None:
        out = out * weight.astype(jnp.float32)
    return out.astype(x.dtype)


if __name__ == "__main__":
    root = jax.random.PRNGKey(0)
    k1, k2, k3 = jax.random.split(root, 3)

    # 1) bf16 with weight (RMSNorm.__init__ -> ones weight), small shapes.
    batch, seq, hidden = 2, 8, 128
    x1 = jax.random.normal(k1, (batch, seq, hidden), dtype=jnp.float32).astype(jnp.bfloat16)
    w1 = jnp.ones((hidden,), dtype=jnp.float32)
    out1 = jax.block_until_ready(rms_norm_pallas(x1, w1, eps=1e-5))
    ref1 = rms_norm_reference(x1, w1, eps=1e-5)
    assert out1.dtype == x1.dtype and out1.shape == x1.shape
    err1 = jnp.max(jnp.abs(out1.astype(jnp.float32) - ref1.astype(jnp.float32)))
    assert err1 <= 1e-2, f"max abs err {err1}"

    # 2) f32 with a row count that is not a multiple of the row tile
    #    (exercises the masked edge-block path that replaced jnp.pad).
    x2 = jax.random.normal(k2, (3, 100, hidden), dtype=jnp.float32)
    w2 = jax.random.normal(k3, (hidden,), dtype=jnp.float32)
    out2 = jax.block_until_ready(rms_norm_pallas(x2, w2, eps=1e-5))
    ref2 = rms_norm_reference(x2, w2, eps=1e-5)
    err2 = jnp.max(jnp.abs(out2 - ref2))
    assert err2 <= 1e-3, f"max abs err {err2}"

    # 3) weight=None variant (kernel without the second input / multiply).
    out3 = jax.block_until_ready(rms_norm_pallas(x1, None, eps=1e-5))
    ref3 = rms_norm_reference(x1, None, eps=1e-5)
    err3 = jnp.max(jnp.abs(out3.astype(jnp.float32) - ref3.astype(jnp.float32)))
    assert err3 <= 1e-2, f"max abs err {err3}"

    print("KERNEL_OK")
</pallas_src>

<mosaic_0001>
module attributes {stable_mosaic.version = 11 : i64} {
  func.func @kernel(%arg0: i32, %arg1: memref<16x128xbf16, #tpu.memory_space<vmem>>, %arg2: memref<1x128xf32, #tpu.memory_space<vmem>>, %arg3: memref<16x128xbf16, #tpu.memory_space<vmem>>) attributes {dimension_semantics = [#tpu.dimension_semantics<parallel>], iteration_bounds = array<i64: 1>, scalar_prefetch = 0 : i64, scratch_operands = 0 : i64, tpu.core_type = #tpu.core_type<tc>, window_params = [{transform_indices = @transform_0, window_bounds = array<i64: 16, 128>}, {pipeline_mode = #tpu.pipeline_mode<synchronous>, transform_indices = @transform_1, window_bounds = array<i64: 1, 128>}, {transform_indices = @transform_2, window_bounds = array<i64: 16, 128>}]} {
    %c0 = arith.constant 0 : index
    %c0_0 = arith.constant 0 : index
    %0 = vector.load %arg1[%c0, %c0_0] : memref<16x128xbf16, #tpu.memory_space<vmem>>, vector<16x128xbf16>
    %1 = arith.extf %0 : vector<16x128xbf16> to vector<16x128xf32>
    %2 = arith.mulf %1, %1 : vector<16x128xf32>
    %cst = arith.constant dense<0.000000e+00> : vector<16xf32>
    %3 = vector.multi_reduction <add>, %2, %cst [1] : vector<16x128xf32> to vector<16xf32>
    %4 = vector.shape_cast %3 : vector<16xf32> to vector<16x1xf32>
    %cst_1 = arith.constant 1.280000e+02 : f32
    %5 = vector.broadcast %cst_1 : f32 to vector<16x1xf32>
    %6 = arith.divf %4, %5 : vector<16x1xf32>
    %cst_2 = arith.constant 9.99999974E-6 : f32
    %7 = vector.broadcast %cst_2 : f32 to vector<16x1xf32>
    %8 = arith.addf %6, %7 : vector<16x1xf32>
    %9 = math.rsqrt %8 : vector<16x1xf32>
    %10 = vector.broadcast %9 : vector<16x1xf32> to vector<16x128xf32>
    %11 = arith.mulf %1, %10 : vector<16x128xf32>
    %c0_3 = arith.constant 0 : index
    %c0_4 = arith.constant 0 : index
    %12 = vector.load %arg2[%c0_3, %c0_4] : memref<1x128xf32, #tpu.memory_space<vmem>>, vector<1x128xf32>
    %13 = vector.broadcast %12 : vector<1x128xf32> to vector<16x128xf32>
    %14 = arith.mulf %11, %13 : vector<16x128xf32>
    %15 = arith.truncf %14 : vector<16x128xf32> to vector<16x128xbf16>
    %c0_5 = arith.constant 0 : index
    %c0_6 = arith.constant 0 : index
    %16 = vector.load %arg3[%c0_5, %c0_6] : memref<16x128xbf16, #tpu.memory_space<vmem>>, vector<16x128xbf16>
    tpu.vector_store %arg3[%c0_5, %c0_6], %15 {strides = array<i32>} : memref<16x128xbf16, #tpu.memory_space<vmem>>, vector<16x128xbf16>,
    return
  }
  func.func @transform_0(%arg0: i32) -> (i32, i32) {
    %c0_i32 = arith.constant 0 : i32
    %c0_i32_0 = arith.constant 0 : i32
    return %arg0, %c0_i32 : i32, i32
  }
  func.func @transform_1(%arg0: i32) -> (i32, i32) {
    %c0_i32 = arith.constant 0 : i32
    %c0_i32_0 = arith.constant 0 : i32
    %c0_i32_1 = arith.constant 0 : i32
    return %c0_i32, %c0_i32_0 : i32, i32
  }
  func.func @transform_2(%arg0: i32) -> (i32, i32) {
    %c0_i32 = arith.constant 0 : i32
    %c0_i32_0 = arith.constant 0 : i32
    return %arg0, %c0_i32 : i32, i32
  }
}

</mosaic_0001>

<llo_original>
// kernel: tpu_custom_call.1
$region0: #{tpu_custom_call.1}
  #allocation0 [shape = 'u32[]', space=smem, size = 0x4, offset = 0x4, fixed_abs, tag = 'smem constant byte address 0x4 - core index']
  #allocation1 [shape = 'u32[144,128]{1,0:T(1,128)}', space=vmem, size = 0x12000, scoped, tag = 'internal scratch']
  %s0 = inlined_call_operand.hbm [shape: bf16[16,128], index: 0, kind: input, shape index: {}]
  %s1 = inlined_call_operand.vmem [shape: f32[1,128], index: 1, kind: input, shape index: {}]
  %s2 = inlined_call_operand.hbm [shape: bf16[16,128], index: 2, kind: output, shape index: {}]
  %s3 = sld [smem:[#allocation0]]
  $region22: #{tpu_custom_call.1} parent=0
    _
  %s5 = ssub.s32 1, %s3
  %s6 = scalar_select 0, %s5, %s3
  $region1: #{tpu_custom_call.1} parent=0
    #allocation2 [shape = 'u8[4096]{0}', space=vmem, size = 0x1000, scoped, tag = 'input window, operand 0, single buffered']
    #allocation3 [shape = 's32[1]{0}', space=sflag, size = 0x4, scoped, tag = 'scoped memory for tpu_custom_call.1']
    #allocation4 [shape = 's32[1]{0}', space=sflag, size = 0x4, scoped, tag = 'scoped memory for tpu_custom_call.1']
    #allocation5 [shape = 'u8[4096]{0}', space=vmem, size = 0x1000, scoped, tag = 'output window, operand 0, single buffered']
    %7 = vsyncpa [#allocation3], 0
    %8 = vsyncpa [#allocation4], 0
    // Predicated region
    $region2: #{tpu_custom_call.1} parent=1 // pred_check
      _
    $region3: #{tpu_custom_call.1} parent=1 // pred_check_branch
      %10 = sbr.rel (0) target = $region5
    $region4: #{tpu_custom_call.1} parent=1 // pred_region
      %s12 = ssub.s32 128, 128
      %13 = vsyncadd [#allocation3], %s12
      %s14 = sshll.u32 [#allocation2], 4
      %s15 = int_to_ptr.vmem [resolvable:$true] %s14
      %20 = dma.hbm_to_vmem [thread:$0]  %s0, 128, %s15, [#allocation3], 64, 64, 4
    $region5: #{tpu_custom_call.1} parent=1 // pred_fallthru
      _
    // Predicated region
    $region6: #{tpu_custom_call.1} parent=1 // pred_check
      _
    $region7: #{tpu_custom_call.1} parent=1 // pred_check_branch
      %22 = sbr.rel (0) target = $region9
    $region8: #{tpu_custom_call.1} parent=1 // pred_region
      _
    $region9: #{tpu_custom_call.1} parent=1 // pred_fallthru
      _
    // Predicated region
    $region10: #{tpu_custom_call.1} parent=1 // pred_check
      _
    $region11: #{tpu_custom_call.1} parent=1 // pred_check_branch
      %24 = sbr.rel (0) target = $region13
    $region12: #{tpu_custom_call.1} parent=1 // pred_region
      %25 = dma.done [#allocation3], 128
    $region13: #{tpu_custom_call.1} parent=1 // pred_fallthru
      _
    %v26 = vld [vmem:[#allocation2] sm:$0xf]
    %v27 = vld [vmem:[#allocation2 + $0x4] sm:$0xf]
    %v28 = vunpack.c.l.bf16 %v26
    %v29 = vunpack.c.l.bf16 %v27
    %v30 = vmul.f32 %v28, %v28
    %v31 = vmul.f32 %v29, %v29
    %32 = vadd.xlane.f32.xlu0 %v30
    %v33 = vpop.xlane.xlu0 %32
    %34 = vadd.xlane.f32.xlu0 %v31
    %v35 = vpop.xlane.xlu0 %34
    %v36 = vrcp.pop 128.0
    %v37 = vmul.f32 %v33, %v36
    %v38 = vmul.f32 %v35, %v36
    %v39 = vadd.f32 %v37, 1e-05
    %v40 = vadd.f32 %v38, 1e-05
    %v41 = vrsqrt.pop %v39
    %v42 = vrsqrt.pop %v40
    %v43 = vmul.f32 %v28, %v41
    %v44 = vmul.f32 %v29, %v42
    %v45 = vld [vmem:[%s1] sm:$0x1]
    %v47 = vlaneseq
    %v48 = vshrl.u32 %v47, 7
    %v49 = vsub.s32 0, %v48
    %v50 = vrot.slane %v45, %v49
    %v52 = vmul.f32 %v43, %v50
    %v53 = vmul.f32 %v44, %v50
    %v54 = vpack.c.bf16 %v53, %v52
    %v56 = vunpack.c.l.b16 %v54
    %v57 = vunpack.c.h.b16 %v54
    %v58 = vpack.c.b16 %v56, %v56
    %v59 = vpack.c.b16 %v57, %v57
    %62 = vst [vmem:[#allocation5] sm:$0xf] %v58
    %63 = vst [vmem:[#allocation5 + $0x4] sm:$0xf] %v59
    // Predicated region
    $region14: #{tpu_custom_call.1} parent=1 // pred_check
      _
    $region15: #{tpu_custom_call.1} parent=1 // pred_check_branch
      %65 = sbr.rel (0) target = $region17
    $region16: #{tpu_custom_call.1} parent=1 // pred_region
      %s67 = ssub.s32 128, 128
      %68 = vsyncadd [#allocation4], %s67
      %s69 = sshll.u32 [#allocation5], 4
      %s70 = int_to_ptr.vmem [resolvable:$true] %s69
      %75 = dma.vmem_to_hbm [thread:$0]  %s70, 128, %s2, [#allocation4], 64, 64, 4
    $region17: #{tpu_custom_call.1} parent=1 // pred_fallthru
      _
    // Predicated region
    $region18: #{tpu_custom_call.1} parent=1 // pred_check
      _
    $region19: #{tpu_custom_call.1} parent=1 // pred_check_branch
      %77 = sbr.rel (0) target = $region21
    $region20: #{tpu_custom_call.1} parent=1 // pred_region
      %78 = dma.done [#allocation4], 128
    $region21: #{tpu_custom_call.1} parent=1 // pred_fallthru
      _
    %79 = vsyncpa [#allocation3], 1
    %80 = vsyncpa [#allocation4], 1

</llo_original>
